<compile_context>
chip_gen: v6e
topology: v6e:2x2x1
jax: 0.10.0
libtpu: 0.0.40
codegen_flags: <defaults>
</compile_context>

<pallas_src>
import jax
import jax.numpy as jnp
from jax.experimental import pallas as pl
from jax.experimental.pallas import tpu as pltpu


def _round_up(x, m):
    return ((x + m - 1) // m) * m


def _cdiv(a, b):
    return (a + b - 1) // b


def _sublane_multiple(dtype):
    # Sub-32-bit dtypes pack along sublanes: min sublane tile 8/16/32.
    return {4: 8, 2: 16, 1: 32}.get(jnp.dtype(dtype).itemsize, 8)


def _choose_lane_tile(dim, cap):
    """Lane (last-dim) tile: the full dim if it fits under `cap` (legal even
    when not a multiple of 128), else a multiple of 128 chosen so the last
    block is nearly full.  Returns (tile, padded_dim)."""
    if dim <= cap:
        return dim, dim
    cap = max(128, (cap // 128) * 128)
    nblocks = _cdiv(dim, cap)
    tile = min(cap, _round_up(_cdiv(dim, nblocks), 128))
    return tile, _round_up(dim, tile)


def _choose_sublane_tile(dim, cap, sub):
    """Sublane (second-last-dim) tile, dtype-aware multiple `sub`."""
    if dim <= cap:
        return dim, dim
    cap = max(sub, (cap // sub) * sub)
    nblocks = _cdiv(dim, cap)
    tile = min(cap, _round_up(_cdiv(dim, nblocks), sub))
    return tile, _round_up(dim, tile)


# ----------------------------- kernels --------------------------------------
# Weight arrives pre-transposed as (K, N), so every dot below is the canonical
# (tm,tk)@(tk,tn) contraction (no transposed RHS).

def _linear_k1_bias_kernel(x_ref, w_ref, b_ref, o_ref):
    acc = jnp.dot(x_ref[...], w_ref[...], preferred_element_type=jnp.float32)
    o_ref[...] = (acc + b_ref[...]).astype(o_ref.dtype)


def _linear_k1_kernel(x_ref, w_ref, o_ref):
    o_ref[...] = jnp.dot(x_ref[...], w_ref[...],
                         preferred_element_type=jnp.float32).astype(o_ref.dtype)


def _linear_acc_bias_kernel(x_ref, w_ref, b_ref, o_ref, acc_ref):
    @pl.when(pl.program_id(2) == 0)
    def _():
        acc_ref[...] = jnp.zeros_like(acc_ref)

    acc_ref[...] += jnp.dot(x_ref[...], w_ref[...],
                            preferred_element_type=jnp.float32)

    @pl.when(pl.program_id(2) == pl.num_programs(2) - 1)
    def _():
        o_ref[...] = (acc_ref[...] + b_ref[...]).astype(o_ref.dtype)


def _linear_acc_kernel(x_ref, w_ref, o_ref, acc_ref):
    @pl.when(pl.program_id(2) == 0)
    def _():
        acc_ref[...] = jnp.zeros_like(acc_ref)

    acc_ref[...] += jnp.dot(x_ref[...], w_ref[...],
                            preferred_element_type=jnp.float32)

    @pl.when(pl.program_id(2) == pl.num_programs(2) - 1)
    def _():
        o_ref[...] = acc_ref[...].astype(o_ref.dtype)


# ----------------------------- wrapper ---------------------------------------

def jac_linear(x, weight, bias=None, *, compute_dtype=None,
               tm_cap=512, tn_cap=512, tk_cap=2048, allow_resident_w=True):
    """y = x @ weight.T + bias (torch.nn.functional.linear semantics).

    `tm_cap/tn_cap/tk_cap` bound the tiled (M,N,K) fallback path; the
    resident-W path sizes itself from the VMEM budget.  `compute_dtype`
    (e.g. jnp.bfloat16) optionally casts the matmul inputs; accumulation is
    always f32 and the output keeps x.dtype."""
    n_out, n_in = weight.shape
    orig_shape = x.shape
    assert orig_shape[-1] == n_in
    out_dtype = x.dtype

    m = 1
    for d in orig_shape[:-1]:
        m *= d
    x2 = x.reshape(m, n_in)

    # One transpose per call (weight is a constant parameter; in a real model
    # store it pre-transposed / let XLA hoist it out of the step function).
    wT = jnp.transpose(weight)                      # (n_in, n_out) = (K, N)

    if compute_dtype is not None:
        x2 = x2.astype(compute_dtype)
        wT = wT.astype(compute_dtype)
    elif wT.dtype != x2.dtype:
        wT = wT.astype(x2.dtype)

    isz_x = jnp.dtype(x2.dtype).itemsize
    isz_w = jnp.dtype(wT.dtype).itemsize
    isz_o = jnp.dtype(out_dtype).itemsize
    sub_x = _sublane_multiple(x2.dtype)
    has_bias = bias is not None

    # ---- generation-aware VMEM budget (v7x: 64 MiB phys; v5e/v6e: 128 MiB) --
    try:
        info = pltpu.get_tpu_info()
        phys_vmem = int(getattr(info, "vmem_capacity_bytes", 64 * 1024 * 1024))
    except Exception:  # no-TPU / older runtime: be conservative (v7x-sized)
        phys_vmem = 64 * 1024 * 1024
    vmem_limit = int(min(phys_vmem * 3 // 4, 100 * 1024 * 1024))
    budget = vmem_limit - (4 << 20)          # headroom for internal scratch

    def footprint(tm_, tn_, tk_, k_grid_):
        b = 2 * tm_ * tk_ * isz_x + 2 * tk_ * tn_ * isz_w + 2 * tm_ * tn_ * isz_o
        if k_grid_ > 1:
            b += tm_ * tn_ * 4               # f32 accumulator scratch
        if has_bias:
            b += 2 * tn_ * 4
        return b

    # ---- tile selection ------------------------------------------------------
    resident = False
    if allow_resident_w:
        w_bytes = 2 * n_in * n_out * isz_w   # (conservatively) double-buffered
        per_row = 2 * n_in * isz_x + 2 * n_out * isz_o
        rem = budget - w_bytes - (2 * n_out * 4 if has_bias else 0)
        if rem >= per_row * min(m, sub_x):
            # W fully VMEM-resident: collapse N and K grid axes (full-dim
            # blocks, constant index map -> W is DMA'd exactly once).
            resident = True
            tk, k_pad = n_in, n_in
            tn, n_pad = n_out, n_out
            tm_lim = max(sub_x, min(1024, rem // per_row))
            tm, m_pad = _choose_sublane_tile(m, tm_lim, sub_x)

    if not resident:
        tm_c, tn_c, tk_c = tm_cap, tn_cap, tk_cap
        while True:
            tk, k_pad = _choose_lane_tile(n_in, tk_c)
            tn, n_pad = _choose_lane_tile(n_out, tn_c)
            tm, m_pad = _choose_sublane_tile(m, tm_c, sub_x)
            if footprint(tm, tn, tk, k_pad // tk) <= budget:
                break
            if tk_c > 128:
                tk_c = max(128, tk_c // 2)
            elif tn_c > 128:
                tn_c = max(128, tn_c // 2)
            elif tm_c > sub_x:
                tm_c = max(sub_x, tm_c // 2)
            else:
                break                        # smallest legal tiles

    m_grid, n_grid, k_grid = m_pad // tm, n_pad // tn, k_pad // tk

    # v7x megacore: guarantee >=2 blocks on a "parallel" axis when it is free
    # (no extra padding) so both TensorCores get work.
    if m_grid == 1 and n_grid == 1 and m >= 2 * sub_x and m % (2 * sub_x) == 0:
        tm = m // 2
        m_pad = m
        m_grid = 2

    grid = (m_grid, n_grid, k_grid)

    # ---- padding (only when a dim is actually tiled; K pad must be zeros) ---
    if (m_pad, k_pad) != (m, n_in):
        x2 = jnp.pad(x2, ((0, m_pad - m), (0, k_pad - n_in)))
    if (k_pad, n_pad) != (n_in, n_out):
        wT = jnp.pad(wT, ((0, k_pad - n_in), (0, n_pad - n_out)))

    x_spec = pl.BlockSpec((tm, tk), lambda i, j, k: (i, k))
    w_spec = pl.BlockSpec((tk, tn), lambda i, j, k: (k, j))
    o_spec = pl.BlockSpec((tm, tn), lambda i, j, k: (i, j))

    args = [x2, wT]
    in_specs = [x_spec, w_spec]

    # Honest re-streaming-aware byte count (advisory for XLA scheduling).
    x_streams = 1 if k_grid == 1 else n_grid
    w_streams = 1 if (n_grid == 1 and k_grid == 1) else m_grid
    flops = 2 * m_pad * n_pad * k_pad
    bytes_accessed = (x_streams * m_pad * k_pad * isz_x
                      + w_streams * k_pad * n_pad * isz_w
                      + m_pad * n_pad * isz_o)

    if has_bias:
        b2 = bias.reshape(1, n_out).astype(jnp.float32)
        if n_pad != n_out:
            b2 = jnp.pad(b2, ((0, 0), (0, n_pad - n_out)))
        args.append(b2)
        in_specs.append(pl.BlockSpec((1, tn), lambda i, j, k: (0, j)))
        bytes_accessed += m_grid * n_pad * 4

    if k_grid == 1:
        kernel = _linear_k1_bias_kernel if has_bias else _linear_k1_kernel
        scratch = []
    else:
        kernel = _linear_acc_bias_kernel if has_bias else _linear_acc_kernel
        scratch = [pltpu.VMEM((tm, tn), jnp.float32)]

    out = pl.pallas_call(
        kernel,
        out_shape=jax.ShapeDtypeStruct((m_pad, n_pad), out_dtype),
        grid_spec=pltpu.PrefetchScalarGridSpec(
            num_scalar_prefetch=0,
            grid=grid,
            in_specs=in_specs,
            out_specs=o_spec,
            scratch_shapes=scratch,
        ),
        compiler_params=pltpu.CompilerParams(
            dimension_semantics=("parallel", "parallel", "arbitrary"),
            vmem_limit_bytes=vmem_limit,
        ),
        cost_estimate=pl.CostEstimate(
            flops=flops, transcendentals=0, bytes_accessed=bytes_accessed),
    )(*args)

    out = out[:m, :n_out]
    return out.reshape(*orig_shape[:-1], n_out)


if __name__ == "__main__":
    # Shapes consistent with JacLinear: weight (n_out, n_in) ~ randn*0.1,
    # bias zeros(n_out); x (batch, seq, n_in).
    n_in, n_out = 32, 16
    batch, seq = 2, 8

    key = jax.random.PRNGKey(0)
    k_w, k_x = jax.random.split(key)
    weight = jax.random.normal(k_w, (n_out, n_in), dtype=jnp.float32) * 0.1
    bias = jnp.zeros((n_out,), dtype=jnp.float32)
    x = jax.random.normal(k_x, (batch, seq, n_in), dtype=jnp.float32)

    # Bias path (resident-W, K-collapsed specialized kernel).
    y = jac_linear(x, weight, bias)
    jax.block_until_ready(y)
    y_ref = jnp.einsum("bsi,oi->bso", x, weight) + bias
    assert y.shape == (batch, seq, n_out)
    assert jnp.allclose(y, y_ref, atol=1e-5, rtol=1e-5)

    # No-bias path (has_bias=False in JacLinear).
    y_nb = jac_linear(x, weight, None)
    jax.block_until_ready(y_nb)
    y_nb_ref = jnp.einsum("bsi,oi->bso", x, weight)
    assert jnp.allclose(y_nb, y_nb_ref, atol=1e-5, rtol=1e-5)

    # Tiled (M,N,K) accumulator path: force small caps and disable resident-W
    # so the K-reduction grid axis + f32 scratch path (used by large layers)
    # is also exercised, still at small sizes.
    n_in2, n_out2, m2 = 384, 256, 64
    k_w2, k_x2 = jax.random.split(jax.random.PRNGKey(1))
    w2 = jax.random.normal(k_w2, (n_out2, n_in2), dtype=jnp.float32) * 0.1
    b2 = jax.random.normal(jax.random.PRNGKey(2), (n_out2,), dtype=jnp.float32) * 0.1
    x2 = jax.random.normal(k_x2, (m2, n_in2), dtype=jnp.float32)
    y2 = jac_linear(x2, w2, b2, tm_cap=32, tn_cap=128, tk_cap=128,
                    allow_resident_w=False)
    jax.block_until_ready(y2)
    y2_ref = x2 @ w2.T + b2
    assert jnp.allclose(y2, y2_ref, atol=1e-4, rtol=1e-4)

    print("KERNEL_OK")
</pallas_src>

<mosaic_0001>
module attributes {stable_mosaic.version = 11 : i64} {
  func.func @_linear_k1_bias_kernel(%arg0: i32, %arg1: i32, %arg2: i32, %arg3: memref<8x32xf32, #tpu.memory_space<vmem>>, %arg4: memref<32x16xf32, #tpu.memory_space<vmem>>, %arg5: memref<1x16xf32, #tpu.memory_space<vmem>>, %arg6: memref<8x16xf32, #tpu.memory_space<vmem>>) attributes {dimension_semantics = [#tpu.dimension_semantics<parallel>, #tpu.dimension_semantics<parallel>, #tpu.dimension_semantics<arbitrary>], iteration_bounds = array<i64: 2, 1, 1>, scalar_prefetch = 0 : i64, scratch_operands = 0 : i64, tpu.core_type = #tpu.core_type<tc>, window_params = [{transform_indices = @transform_0, window_bounds = array<i64: 8, 32>}, {transform_indices = @transform_1, window_bounds = array<i64: 32, 16>}, {transform_indices = @transform_2, window_bounds = array<i64: 1, 16>}, {transform_indices = @transform_3, window_bounds = array<i64: 8, 16>}]} {
    %c0 = arith.constant 0 : index
    %c0_0 = arith.constant 0 : index
    %0 = vector.load %arg3[%c0, %c0_0] : memref<8x32xf32, #tpu.memory_space<vmem>>, vector<8x32xf32>
    %c0_1 = arith.constant 0 : index
    %c0_2 = arith.constant 0 : index
    %1 = vector.load %arg4[%c0_1, %c0_2] : memref<32x16xf32, #tpu.memory_space<vmem>>, vector<32x16xf32>
    %cst = arith.constant dense<0.000000e+00> : vector<8x16xf32>
    %2 = tpu.matmul %0, %1, %cst {dimension_numbers = #tpu.dot_dimension_numbers<[1], [0], [0], [1], [0, 0, 1, 1], [], []>} : vector<8x32xf32>, vector<32x16xf32>, vector<8x16xf32> -> vector<8x16xf32>
    %c0_3 = arith.constant 0 : index
    %c0_4 = arith.constant 0 : index
    %3 = vector.load %arg5[%c0_3, %c0_4] : memref<1x16xf32, #tpu.memory_space<vmem>>, vector<1x16xf32>
    %4 = vector.broadcast %3 : vector<1x16xf32> to vector<8x16xf32>
    %5 = arith.addf %2, %4 : vector<8x16xf32>
    %c0_5 = arith.constant 0 : index
    %c0_6 = arith.constant 0 : index
    %6 = vector.load %arg6[%c0_5, %c0_6] : memref<8x16xf32, #tpu.memory_space<vmem>>, vector<8x16xf32>
    tpu.vector_store %arg6[%c0_5, %c0_6], %5 {strides = array<i32>} : memref<8x16xf32, #tpu.memory_space<vmem>>, vector<8x16xf32>,
    return
  }
  func.func @transform_0(%arg0: i32, %arg1: i32, %arg2: i32) -> (i32, i32) {
    %c0_i32 = arith.constant 0 : i32
    return %arg0, %arg2 : i32, i32
  }
  func.func @transform_1(%arg0: i32, %arg1: i32, %arg2: i32) -> (i32, i32) {
    %c0_i32 = arith.constant 0 : i32
    return %arg2, %arg1 : i32, i32
  }
  func.func @transform_2(%arg0: i32, %arg1: i32, %arg2: i32) -> (i32, i32) {
    %c0_i32 = arith.constant 0 : i32
    %c0_i32_0 = arith.constant 0 : i32
    return %c0_i32, %arg1 : i32, i32
  }
  func.func @transform_3(%arg0: i32, %arg1: i32, %arg2: i32) -> (i32, i32) {
    %c0_i32 = arith.constant 0 : i32
    return %arg0, %arg1 : i32, i32
  }
}

</mosaic_0001>

<llo_original>
// kernel: tpu_custom_call.1
$region0: #{tpu_custom_call.1}
  #allocation0 [shape = 'u32[]', space=smem, size = 0x4, offset = 0x4, fixed_abs, tag = 'smem constant byte address 0x4 - core index']
  #allocation1 [shape = 'u32[144,128]{1,0:T(1,128)}', space=vmem, size = 0x12000, scoped, tag = 'internal scratch']
  %s0 = inlined_call_operand.vmem [shape: f32[16,32], index: 0, kind: input, shape index: {}]
  %s1 = inlined_call_operand.vmem [shape: f32[32,16], index: 1, kind: input, shape index: {}]
  %s2 = inlined_call_operand.vmem [shape: f32[1,16], index: 2, kind: input, shape index: {}]
  %s3 = inlined_call_operand.hbm [shape: f32[16,16], index: 3, kind: output, shape index: {}]
  %s4 = sld [smem:[#allocation0]]
  $region45: #{tpu_custom_call.1} parent=0
    _
  %s6 = ssub.s32 1, %s4
  %s7 = scalar_select 0, %s6, %s4
  $region1: #{tpu_custom_call.1} parent=0
    #allocation2 [shape = 'u8[8192]{0}', space=vmem, size = 0x2000, scoped, tag = 'output window, operand 0']
    #allocation3 [shape = 's32[2]{0}', space=sflag, size = 0x8, scoped, tag = 'scoped memory for tpu_custom_call.1']
    %8 = vsyncpa [#allocation3], 0
    %s9 = scalar_lea.sflag [#allocation3], 1
    %10 = vsyncpa %s9, 0
    loop: start=0, step=1, limit=4
    $region2: #{tpu_custom_call.1} parent=1 // loop_pre_header
      _
    $region3: #{tpu_custom_call.1} parent=1 // loop_header
      %s12 = sphi 0, %s16
      %p13 = scmp.ge.s32.totalorder %s12, 4
      %s19 = sphi 0, %s38
      %s20 = sphi 0, %s34
      %s21 = sphi 0, %s30
      %s22 = sphi 0, %s19
      %s23 = sphi 0, %s20
      %s24 = sphi 0, %s21
      %s25 = sphi 0, %s22
      %s26 = sphi 0, %s23
      %s27 = sphi 0, %s24
      %s43 = sphi 0, %s45
      %s46 = sphi 0, %s43
      %s47 = sphi 0, %s46
      %s63 = sphi 0, %s47
      %s71 = sphi 0, %s73
      %s74 = sphi 0, %s71
      %s75 = sphi 0, %s74
      %s91 = sphi 0, %s75
      %s97 = sphi 0, %s99
      %s100 = sphi 0, %s97
      %s101 = sphi 0, %s100
      %s117 = sphi 0, %s101
      %s125 = sphi 0, %s127
      %s128 = sphi 0, %s125
      %s129 = sphi 0, %s128
      %s145 = sphi 0, %s129
    $region4: #{tpu_custom_call.1} parent=1 // loop_header_branch
      %15 = sbr.rel (%p13) target = $region8
    $region5: #{tpu_custom_call.1} parent=1 // loop_body
      %s17 = ssub.s32 %s12, 1
      %s18 = ssub.s32 %s12, 2
      %s28 = sadd.s32 1, %s21
      %p29 = scmp.ge.s32.totalorder %s28, 1
      %s30 = scalar_select %p29, 0, %s28
      %s31 = sadd.s32 1, %s20
      %s32 = scalar_select %p29, %s31, %s20
      %p33 = scmp.ge.s32.totalorder %s32, 1
      %s34 = scalar_select %p33, 0, %s32
      %s35 = sadd.s32 1, %s19
      %s36 = scalar_select %p33, %s35, %s19
      %p37 = scmp.ge.s32.totalorder %s36, 2
      %s38 = scalar_select %p37, 0, %s36
      %s39 = ssub.s32 %s19, %s38
      %s40 = ssub.s32 %s21, %s30
      %s41 = sor.u32 %s39, %s40
      %p42 = scmp.eq.s32.totalorder %s41, 0
      %s44 = sadd.s32 %s43, 1
      %s45 = scalar_select %p42, %s43, %s44
      %p48 = pneg %p42
      %p49 = scmp.eq.s32.totalorder %s12, 1
      %p50 = por %p48, %p49
      %p51 = scmp.ne.s32.totalorder %s43, %s46
      %p52 = scmp.eq.s32.totalorder %s12, 0
      %p53 = por %p51, %p52
      %p54 = scmp.ne.s32.totalorder %s43, %s46
      %p55 = scmp.eq.s32.totalorder %s17, 1
      %p56 = por %p54, %p55
      %p57 = scmp.ne.s32.totalorder %s46, %s47
      %p58 = scmp.eq.s32.totalorder %s17, 0
      %p59 = por %p57, %p58
      %p60 = scmp.ne.s32.totalorder %s46, %s47
      %p61 = scmp.eq.s32.totalorder %s18, 1
      %p62 = por %p60, %p61
      %p64 = scmp.ne.s32.totalorder %s47, %s63
      %p65 = scmp.eq.s32.totalorder %s18, 0
      %p66 = por %p64, %p65
      %s67 = ssub.s32 %s21, %s30
      %s68 = ssub.s32 %s20, %s34
      %s69 = sor.u32 %s67, %s68
      %p70 = scmp.eq.s32.totalorder %s69, 0
      %s72 = sadd.s32 %s71, 1
      %s73 = scalar_select %p70, %s71, %s72
      %p76 = pneg %p70
      %p77 = scmp.eq.s32.totalorder %s12, 1
      %p78 = por %p76, %p77
      %p79 = scmp.ne.s32.totalorder %s71, %s74
      %p80 = scmp.eq.s32.totalorder %s12, 0
      %p81 = por %p79, %p80
      %p82 = scmp.ne.s32.totalorder %s71, %s74
      %p83 = scmp.eq.s32.totalorder %s17, 1
      %p84 = por %p82, %p83
      %p85 = scmp.ne.s32.totalorder %s74, %s75
      %p86 = scmp.eq.s32.totalorder %s17, 0
      %p87 = por %p85, %p86
      %p88 = scmp.ne.s32.totalorder %s74, %s75
      %p89 = scmp.eq.s32.totalorder %s18, 1
      %p90 = por %p88, %p89
      %p92 = scmp.ne.s32.totalorder %s75, %s91
      %p93 = scmp.eq.s32.totalorder %s18, 0
      %p94 = por %p92, %p93
      %s95 = ssub.s32 %s20, %s34
      %p96 = scmp.eq.s32.totalorder %s95, 0
      %s98 = sadd.s32 %s97, 1
      %s99 = scalar_select %p96, %s97, %s98
      %p102 = pneg %p96
      %p103 = scmp.eq.s32.totalorder %s12, 1
      %p104 = por %p102, %p103
      %p105 = scmp.ne.s32.totalorder %s97, %s100
      %p106 = scmp.eq.s32.totalorder %s12, 0
      %p107 = por %p105, %p106
      %p108 = scmp.ne.s32.totalorder %s97, %s100
      %p109 = scmp.eq.s32.totalorder %s17, 1
      %p110 = por %p108, %p109
      %p111 = scmp.ne.s32.totalorder %s100, %s101
      %p112 = scmp.eq.s32.totalorder %s17, 0
      %p113 = por %p111, %p112
      %p114 = scmp.ne.s32.totalorder %s100, %s101
      %p115 = scmp.eq.s32.totalorder %s18, 1
      %p116 = por %p114, %p115
      %p118 = scmp.ne.s32.totalorder %s101, %s117
      %p119 = scmp.eq.s32.totalorder %s18, 0
      %p120 = por %p118, %p119
      %s121 = ssub.s32 %s19, %s38
      %s122 = ssub.s32 %s20, %s34
      %s123 = sor.u32 %s121, %s122
      %p124 = scmp.eq.s32.totalorder %s123, 0
      %s126 = sadd.s32 %s125, 1
      %s127 = scalar_select %p124, %s125, %s126
      %p130 = pneg %p124
      %p131 = scmp.eq.s32.totalorder %s12, 1
      %p132 = por %p130, %p131
      %p133 = scmp.ne.s32.totalorder %s125, %s128
      %p134 = scmp.eq.s32.totalorder %s12, 0
      %p135 = por %p133, %p134
      %p136 = scmp.ne.s32.totalorder %s125, %s128
      %p137 = scmp.eq.s32.totalorder %s17, 1
      %p138 = por %p136, %p137
      %p139 = scmp.ne.s32.totalorder %s128, %s129
      %p140 = scmp.eq.s32.totalorder %s17, 0
      %p141 = por %p139, %p140
      %p142 = scmp.ne.s32.totalorder %s128, %s129
      %p143 = scmp.eq.s32.totalorder %s18, 1
      %p144 = por %p142, %p143
      %p146 = scmp.ne.s32.totalorder %s129, %s145
      %p147 = scmp.eq.s32.totalorder %s18, 0
      %p148 = por %p146, %p147
      %p149 = scmp.le.s32.totalorder 1, %s12
      %p150 = scmp.lt.s32.totalorder %s12, 3
      %p151 = pnand %p149, %p150
      %p152 = pneg %p151
      // Predicated region
      $region9: #{tpu_custom_call.1} parent=5 // pred_check
        _
      $region10: #{tpu_custom_call.1} parent=5 // pred_check_branch
        %154 = sbr.rel (%p151) target = $region12
      $region11: #{tpu_custom_call.1} parent=5 // pred_region
        %s155 = ssub.s32 %s12, 1
        // Predicated region
        $region13: #{tpu_custom_call.1} parent=11 // pred_check
          %p156 = pneg %p87
        $region14: #{tpu_custom_call.1} parent=11 // pred_check_branch
          %158 = sbr.rel (%p156) target = $region16
        $region15: #{tpu_custom_call.1} parent=11 // pred_region
          %s159 = smul.u32 4, %s24
          %p160 = scmp.lt.s32.totalorder %s159, 3
          %s161 = scalar_select %p160, %s159, 3
          %p162 = scmp.lt.s32.totalorder %s23, 0
          %s163 = scalar_select %p162, %s23, 0
          %s164 = sadd.s32 %s163, %s161
          %s165 = smul.addr %s164, 8
          %s166 = scalar_lea.vmem %s1, %s165
          %s167 = smul.u32 4, %s24
        $region16: #{tpu_custom_call.1} parent=11 // pred_fallthru
          _
        // Predicated region
        $region17: #{tpu_custom_call.1} parent=11 // pred_check
          %p168 = pneg %p113
        $region18: #{tpu_custom_call.1} parent=11 // pred_check_branch
          %170 = sbr.rel (%p168) target = $region20
        $region19: #{tpu_custom_call.1} parent=11 // pred_region
          %p171 = scmp.lt.s32.totalorder %s23, 0
          %s172 = scalar_select %p171, %s23, 0
          %s173 = scalar_lea.vmem %s2, %s172
        $region20: #{tpu_custom_call.1} parent=11 // pred_fallthru
          _
      $region12: #{tpu_custom_call.1} parent=5 // pred_fallthru
        _
      %p174 = scmp.lt.s32.totalorder %s12, 2
      // Predicated region
      $region21: #{tpu_custom_call.1} parent=5 // pred_check
        %p175 = pneg %p174
      $region22: #{tpu_custom_call.1} parent=5 // pred_check_branch
        %177 = sbr.rel (%p175) target = $region24
      $region23: #{tpu_custom_call.1} parent=5 // pred_region
        // Predicated region
        $region25: #{tpu_custom_call.1} parent=23 // pred_check
          %p178 = pneg %p53
        $region26: #{tpu_custom_call.1} parent=23 // pred_check_branch
          %180 = sbr.rel (%p178) target = $region28
        $region27: #{tpu_custom_call.1} parent=23 // pred_region
          %p181 = scmp.lt.s32.totalorder %s19, 1
          %s182 = scalar_select %p181, %s19, 1
          %p183 = scmp.lt.s32.totalorder %s21, 0
          %s184 = scalar_select %p183, %s21, 0
          %s185 = sadd.s32 %s184, %s182
          %s186 = smul.addr %s185, 8
          %s187 = scalar_lea.vmem %s0, %s186
        $region28: #{tpu_custom_call.1} parent=23 // pred_fallthru
          _
      $region24: #{tpu_custom_call.1} parent=5 // pred_fallthru
        _
      %p188 = scmp.le.s32.totalorder 1, %s12
      %p189 = scmp.lt.s32.totalorder %s12, 3
      %p190 = pnand %p188, %p189
      %p191 = pneg %p190
      // Predicated region
      $region29: #{tpu_custom_call.1} parent=5 // pred_check
        _
      $region30: #{tpu_custom_call.1} parent=5 // pred_check_branch
        %193 = sbr.rel (%p190) target = $region32
      $region31: #{tpu_custom_call.1} parent=5 // pred_region
        %s194 = ssub.s32 %s12, 1
        %p195 = scmp.lt.s32.totalorder %s22, 1
        %s196 = scalar_select %p195, %s22, 1
        %p197 = scmp.lt.s32.totalorder %s24, 0
        %s198 = scalar_select %p197, %s24, 0
        %s199 = sadd.s32 %s198, %s196
        %s200 = smul.addr %s199, 8
        %s201 = scalar_lea.vmem %s0, %s200
        %p202 = pneg %p59
        %p203 = pneg %p56
        %s204 = smul.u32 4, %s24
        %p205 = scmp.lt.s32.totalorder %s204, 3
        %s206 = scalar_select %p205, %s204, 3
        %p207 = scmp.lt.s32.totalorder %s23, 0
        %s208 = scalar_select %p207, %s23, 0
        %s209 = sadd.s32 %s208, %s206
        %s210 = smul.addr %s209, 8
        %s211 = scalar_lea.vmem %s1, %s210
        %p212 = pneg %p87
        %p213 = pneg %p84
        %p214 = scmp.lt.s32.totalorder %s23, 0
        %s215 = scalar_select %p214, %s23, 0
        %s216 = scalar_lea.vmem %s2, %s215
        %p217 = pneg %p113
        %p218 = pneg %p110
        %p219 = pneg %p141
        %p220 = pneg %p138
        %s221 = sand.u32 %s128, 1
        %s222 = scalar_lea.sflag [#allocation3], %s221
        %s223 = sand.u32 %s128, 1
        %s224 = smul.addr %s223, 8
        %s225 = scalar_lea.vmem [#allocation2], %s224
        %p226 = scmp.lt.s32.totalorder %s22, 1
        %s227 = scalar_select %p226, %s22, 1
        %p228 = scmp.lt.s32.totalorder %s24, 0
        %s229 = scalar_select %p228, %s24, 0
        %s230 = sadd.s32 %s229, %s227
        %s231 = smul.addr %s230, 8
        %s232 = scalar_lea.vmem %s0, %s231
        %s233 = smul.u32 4, %s24
        %p234 = scmp.lt.s32.totalorder %s233, 3
        %s235 = scalar_select %p234, %s233, 3
        %p236 = scmp.lt.s32.totalorder %s23, 0
        %s237 = scalar_select %p236, %s23, 0
        %s238 = sadd.s32 %s237, %s235
        %s239 = smul.addr %s238, 8
        %s240 = scalar_lea.vmem %s1, %s239
        %s241 = smul.u32 4, %s24
        %p242 = scmp.lt.s32.totalorder %s23, 0
        %s243 = scalar_select %p242, %s23, 0
        %s244 = scalar_lea.vmem %s2, %s243
        %v245 = vld [vmem:[%s232] sm:$0xff]
        %v246 = vld [vmem:[%s240] sm:$0xff]
        %v247 = vld [vmem:[%s240 + $0x8] sm:$0xff]
        %v248 = vld [vmem:[%s240 + $0x10] sm:$0xff]
        %v249 = vld [vmem:[%s240 + $0x18] sm:$0xff]
        %v250 = vld [vmem:[%s244] sm:$0x1]
        %v252 = vlaneseq
        %v253 = vshrl.u32 %v252, 7
        %v254 = vsub.s32 0, %v253
        %v255 = vrot.slane %v250, %v254
        %vm257 = vcmask 261120
        %v259 = vsel %vm257, %v245, 0
        %261 = vmatprep.subr.mxu0 0.0
        %262 = vmatpush1.msra.mxu0 0.0
        %263 = vmatprep.subr.mxu0 0.0
        %264 = vmatpush1.msra.mxu0 0.0
        %265 = vmatprep.subr.mxu0 0.0
        %266 = vmatpush1.msra.mxu0 0.0
        %267 = vmatprep.subr.mxu0 0.0
        %268 = vmatpush1.msra.mxu0 0.0
        %269 = vmatprep.subr.mxu0 0.0
        %270 = vmatpush1.msra.mxu0 0.0
        %271 = vmatprep.subr.mxu0 0.0
        %272 = vmatpush1.msra.mxu0 0.0
        %273 = vmatprep.subr.mxu0 0.0
        %274 = vmatpush1.msra.mxu0 0.0
        %275 = vmatprep.subr.mxu0 0.0
        %276 = vmatpush1.msra.mxu0 0.0
        %277 = vmatprep.subr.mxu0 0.0
        %278 = vmatpush1.msra.mxu0 0.0
        %279 = vmatprep.subr.mxu0 0.0
        %280 = vmatpush1.msra.mxu0 0.0
        %281 = vmatprep.subr.mxu0 0.0
        %282 = vmatpush1.msra.mxu0 0.0
        %283 = vmatprep.subr.mxu0 0.0
        %284 = vmatpush1.msra.mxu0 0.0
        %285 = vmatprep.subr.mxu0 0.0
        %286 = vmatpush1.msra.mxu0 %v249
        %287 = vmatprep.subr.mxu0 0.0
        %288 = vmatpush1.msra.mxu0 %v248
        %289 = vmatprep.subr.mxu0 0.0
        %290 = vmatpush1.msra.mxu0 %v247
        %291 = vmatprep.subr.mxu0 0.0
        %292 = vmatpush1.msra.mxu0 %v246
        %293 = vmatprep.subr.mxu0 0.0
        %294 = vmatpush2.msra.mxu0 0.0
        %295 = vmatprep.subr.mxu0 0.0
        %296 = vmatpush2.msra.mxu0 0.0
        %297 = vmatprep.subr.mxu0 0.0
        %298 = vmatpush2.msra.mxu0 0.0
        %299 = vmatprep.subr.mxu0 0.0
        %300 = vmatpush2.msra.mxu0 0.0
        %301 = vmatprep.subr.mxu0 0.0
        %302 = vmatpush2.msra.mxu0 0.0
        %303 = vmatprep.subr.mxu0 0.0
        %304 = vmatpush2.msra.mxu0 0.0
        %305 = vmatprep.subr.mxu0 0.0
        %306 = vmatpush2.msra.mxu0 0.0
        %307 = vmatprep.subr.mxu0 0.0
        %308 = vmatpush2.msra.mxu0 0.0
        %309 = vmatprep.subr.mxu0 0.0
        %310 = vmatpush2.msra.mxu0 0.0
        %311 = vmatprep.subr.mxu0 0.0
        %312 = vmatpush2.msra.mxu0 0.0
        %313 = vmatprep.subr.mxu0 0.0
        %314 = vmatpush2.msra.mxu0 0.0
        %315 = vmatprep.subr.mxu0 0.0
        %316 = vmatpush2.msra.mxu0 0.0
        %317 = vmatprep.subr.mxu0 0.0
        %318 = vmatpush2.msra.mxu0 0.0
        %319 = vmatprep.subr.mxu0 0.0
        %320 = vmatpush2.msra.mxu0 0.0
        %321 = vmatprep.subr.mxu0 0.0
        %322 = vmatpush2.msra.mxu0 0.0
        %323 = vmatprep.subr.mxu0 0.0
        %324 = vmatpush2.msra.mxu0 0.0
        %325 = vmatprep.mubr.f32.mxu0 0.0
        %326 = vmatmul.mubr.f32.gmra.mxu0 %v259
        %v327 = vpop.f32.mrf.mxu0
        %v328 = vadd.f32 %v255, %v327
        %v329 = vpop.f32.mrf.mxu0
        %330 = vdwg.mxu0
        %vm331 = vcmask 130048
        %332 = vst.msk [vmem:[%s225] sm:$0xff] %vm331, %v328
        %s333 = sand.u32 %s128, 1
        %s334 = scalar_lea.sflag [#allocation3], %s333
        %s335 = sand.u32 %s128, 1
        %s336 = smul.addr %s335, 8
        %s337 = scalar_lea.vmem [#allocation2], %s336
        // Predicated region
        $region33: #{tpu_custom_call.1} parent=31 // pred_check
          %p338 = pneg %p138
        $region34: #{tpu_custom_call.1} parent=31 // pred_check_branch
          %340 = sbr.rel (%p338) target = $region36
        $region35: #{tpu_custom_call.1} parent=31 // pred_region
          %s342 = ssub.s32 128, 128
          %343 = vsyncadd %s334, %s342
          %s344 = sadd.s32 %s23, %s22
          %s345 = smul.addr %s344, 128
          %s346 = scalar_lea.hbm %s3, %s345
          %s348 = sshll.u32 %s337, 4
          %s349 = int_to_ptr.vmem [resolvable:$true] %s348
          %351 = dma.vmem_to_hbm [thread:$0]  %s349, 128, %s346, %s334
        $region36: #{tpu_custom_call.1} parent=31 // pred_fallthru
          _
      $region32: #{tpu_custom_call.1} parent=5 // pred_fallthru
        _
      %p352 = scmp.le.s32.totalorder 2, %s12
      // Predicated region
      $region37: #{tpu_custom_call.1} parent=5 // pred_check
        %p353 = pneg %p352
      $region38: #{tpu_custom_call.1} parent=5 // pred_check_branch
        %355 = sbr.rel (%p353) target = $region40
      $region39: #{tpu_custom_call.1} parent=5 // pred_region
        %s356 = ssub.s32 %s12, 2
        // Predicated region
        $region41: #{tpu_custom_call.1} parent=39 // pred_check
          %p357 = pneg %p144
        $region42: #{tpu_custom_call.1} parent=39 // pred_check_branch
          %359 = sbr.rel (%p357) target = $region44
        $region43: #{tpu_custom_call.1} parent=39 // pred_region
          %s360 = sand.u32 %s129, 1
          %s361 = scalar_lea.sflag [#allocation3], %s360
          %s362 = sand.u32 %s129, 1
          %s363 = smul.addr %s362, 8
          %s364 = scalar_lea.vmem [#allocation2], %s363
          %365 = dma.done %s361, 128
        $region44: #{tpu_custom_call.1} parent=39 // pred_fallthru
          _
      $region40: #{tpu_custom_call.1} parent=5 // pred_fallthru
        _
    $region6: #{tpu_custom_call.1} parent=1 // loop_footer
      %s16 = sadd.s32 1, %s12
    $region7: #{tpu_custom_call.1} parent=1 // loop_footer_branch
      %11 = sbr.rel target = $region3
    $region8: #{tpu_custom_call.1} parent=1 // loop_exit
      _
    %366 = vsyncpa [#allocation3], 1
    %s367 = scalar_lea.sflag [#allocation3], 1
    %368 = vsyncpa %s367, 1

</llo_original>
